<compile_context>
chip_gen: v7x
topology: tpu7x:2x2x1
jax: 0.10.0
libtpu: 0.0.40
codegen_flags: <defaults>
</compile_context>

<pallas_src>
import jax
import jax.numpy as jnp
from jax.experimental import pallas as pl
from jax.experimental.pallas import tpu as pltpu


def _ddpm_forward_kernel(sa_ref, sb_ref, x_ref, eta_ref, out_ref):
    # sa_ref / sb_ref : (TB, 1)  f32 VMEM per-row scale columns
    # x_ref / eta_ref / out_ref : (TB, TC) VMEM tiles
    x = x_ref[...].astype(jnp.float32)
    e = eta_ref[...].astype(jnp.float32)
    out = sa_ref[...] * x + sb_ref[...] * e          # lane-broadcast FMA in f32
    out_ref[...] = out.astype(out_ref.dtype)


def make_alpha_bars(n_steps=350, min_beta=1e-4, max_beta=0.02):
    betas = jnp.linspace(min_beta, max_beta, n_steps, dtype=jnp.float32)
    alphas = 1.0 - betas
    alpha_bars = jnp.cumprod(alphas)
    return betas, alphas, alpha_bars


def _round_up(x, m):
    return ((x + m - 1) // m) * m


def _pick_tiles(n, chw_pad, itemsize):
    """Choose (TC lane width, TB row tile, rows, padded rows)."""
    # Largest lane width (mult of 128) dividing the padded image size that
    # still yields >= 16 rows total (dense sublanes without batch padding).
    tc = 128
    for cand in (2048, 1024, 512, 256):
        if chw_pad % cand == 0 and n * (chw_pad // cand) >= 16:
            tc = cand
            break
    rows = n * (chw_pad // tc)
    rows_padded = _round_up(rows, 8)

    # Row tile: multiple of 8, sized so each (TB, TC) array tile is ~1 MiB
    # (3 streams x 2 pipeline buffers ~ 6 MiB: fits v5e/v6e/v7x scoped VMEM).
    budget_bytes = 1 << 20
    tb = max(8, (budget_bytes // (tc * itemsize)) // 8 * 8)
    tb = min(tb, rows_padded)
    # Prefer >= 2 grid steps when there is enough work (pipelining; v7x 2 TCs).
    if rows_padded // tb < 2 and rows_padded >= 16:
        tb = max(8, (rows_padded // 2) // 8 * 8)

    rows_final = _round_up(rows, tb)
    return tc, tb, rows, rows_final


def ddpm_forward(alpha_bars, x0, t, eta):
    """x0, eta: (n, c, h, w); t: (n,) int32 timesteps."""
    n, c, h, w = x0.shape
    chw = c * h * w
    out_dtype = x0.dtype

    a_bar = alpha_bars[t].astype(jnp.float32)        # (n,)
    sqrt_ab = jnp.sqrt(a_bar)                        # (n,)
    sqrt_omb = jnp.sqrt(1.0 - a_bar)                 # (n,)

    chw_pad = _round_up(chw, 128)
    tc, tb, rows, rows_final = _pick_tiles(n, chw_pad, jnp.dtype(out_dtype).itemsize)
    r_per_img = chw_pad // tc

    def to_rows(img):
        flat = img.reshape(n, chw)
        if chw_pad != chw:
            flat = jnp.pad(flat, ((0, 0), (0, chw_pad - chw)))
        rows2d = flat.reshape(n * r_per_img, tc)
        if rows_final != rows:
            rows2d = jnp.pad(rows2d, ((0, rows_final - rows), (0, 0)))
        return rows2d

    x_rows = to_rows(x0)
    e_rows = to_rows(eta)

    # Per-row scale columns: each image owns r_per_img consecutive rows.
    sa_col = jnp.repeat(sqrt_ab, r_per_img).reshape(rows, 1)
    sb_col = jnp.repeat(sqrt_omb, r_per_img).reshape(rows, 1)
    if rows_final != rows:
        sa_col = jnp.pad(sa_col, ((0, rows_final - rows), (0, 0)))
        sb_col = jnp.pad(sb_col, ((0, rows_final - rows), (0, 0)))

    out_rows = pl.pallas_call(
        _ddpm_forward_kernel,
        out_shape=jax.ShapeDtypeStruct((rows_final, tc), out_dtype),
        grid=(rows_final // tb,),
        in_specs=[
            pl.BlockSpec((tb, 1), lambda i: (i, 0)),     # sqrt(alpha_bar) column
            pl.BlockSpec((tb, 1), lambda i: (i, 0)),     # sqrt(1 - alpha_bar) column
            pl.BlockSpec((tb, tc), lambda i: (i, 0)),    # x0 rows
            pl.BlockSpec((tb, tc), lambda i: (i, 0)),    # eta rows
        ],
        out_specs=pl.BlockSpec((tb, tc), lambda i: (i, 0)),
        compiler_params=pltpu.CompilerParams(
            dimension_semantics=("parallel",),
            vmem_limit_bytes=32 * 1024 * 1024,
        ),
    )(sa_col, sb_col, x_rows, e_rows)

    out = out_rows[:rows].reshape(n, chw_pad)[:, :chw].reshape(n, c, h, w)
    return out


if __name__ == "__main__":
    # Small deterministic example: batch=2, channels=4, spatial=16x16.
    n_steps = 350
    _, _, alpha_bars = make_alpha_bars(n_steps=n_steps)

    key = jax.random.PRNGKey(0)
    kx, ke, kt = jax.random.split(key, 3)
    n, c, h, w = 2, 4, 16, 16
    x0 = jax.random.normal(kx, (n, c, h, w), dtype=jnp.float32)
    eta = jax.random.normal(ke, (n, c, h, w), dtype=jnp.float32)
    t = jax.random.randint(kt, (n,), 0, n_steps, dtype=jnp.int32)

    noisy = ddpm_forward(alpha_bars, x0, t, eta)
    noisy = jax.block_until_ready(noisy)

    # Pure-JAX reference check.
    a_bar = alpha_bars[t]
    ref = (jnp.sqrt(a_bar).reshape(n, 1, 1, 1) * x0
           + jnp.sqrt(1.0 - a_bar).reshape(n, 1, 1, 1) * eta)
    assert jnp.allclose(noisy, ref, atol=1e-5, rtol=1e-5)

    # TODO(synk): MyDDPM.backward delegates to an arbitrary external `network`
    # module (a UNet passed at construction); no network is defined here, so
    # only the diffusion forward (noising) pass is implemented.
    print("KERNEL_OK")
</pallas_src>

<mosaic_0001>
module attributes {stable_mosaic.version = 11 : i64} {
  func.func @_ddpm_forward_kernel(%arg0: i32, %arg1: memref<8x1xf32, #tpu.memory_space<vmem>>, %arg2: memref<8x1xf32, #tpu.memory_space<vmem>>, %arg3: memref<8x128xf32, #tpu.memory_space<vmem>>, %arg4: memref<8x128xf32, #tpu.memory_space<vmem>>, %arg5: memref<8x128xf32, #tpu.memory_space<vmem>>) attributes {dimension_semantics = [#tpu.dimension_semantics<parallel>], iteration_bounds = array<i64: 2>, scalar_prefetch = 0 : i64, scratch_operands = 0 : i64, tpu.core_type = #tpu.core_type<tc>, window_params = [{transform_indices = @transform_0, window_bounds = array<i64: 8, 1>}, {transform_indices = @transform_1, window_bounds = array<i64: 8, 1>}, {transform_indices = @transform_2, window_bounds = array<i64: 8, 128>}, {transform_indices = @transform_3, window_bounds = array<i64: 8, 128>}, {transform_indices = @transform_4, window_bounds = array<i64: 8, 128>}]} {
    %c0 = arith.constant 0 : index
    %c0_0 = arith.constant 0 : index
    %0 = vector.load %arg3[%c0, %c0_0] : memref<8x128xf32, #tpu.memory_space<vmem>>, vector<8x128xf32>
    %c0_1 = arith.constant 0 : index
    %c0_2 = arith.constant 0 : index
    %1 = vector.load %arg4[%c0_1, %c0_2] : memref<8x128xf32, #tpu.memory_space<vmem>>, vector<8x128xf32>
    %c0_3 = arith.constant 0 : index
    %c0_4 = arith.constant 0 : index
    %2 = vector.load %arg1[%c0_3, %c0_4] : memref<8x1xf32, #tpu.memory_space<vmem>>, vector<8x1xf32>
    %3 = vector.broadcast %2 : vector<8x1xf32> to vector<8x128xf32>
    %4 = arith.mulf %3, %0 : vector<8x128xf32>
    %c0_5 = arith.constant 0 : index
    %c0_6 = arith.constant 0 : index
    %5 = vector.load %arg2[%c0_5, %c0_6] : memref<8x1xf32, #tpu.memory_space<vmem>>, vector<8x1xf32>
    %6 = vector.broadcast %5 : vector<8x1xf32> to vector<8x128xf32>
    %7 = arith.mulf %6, %1 : vector<8x128xf32>
    %8 = arith.addf %4, %7 : vector<8x128xf32>
    %c0_7 = arith.constant 0 : index
    %c0_8 = arith.constant 0 : index
    %9 = vector.load %arg5[%c0_7, %c0_8] : memref<8x128xf32, #tpu.memory_space<vmem>>, vector<8x128xf32>
    tpu.vector_store %arg5[%c0_7, %c0_8], %8 {strides = array<i32>} : memref<8x128xf32, #tpu.memory_space<vmem>>, vector<8x128xf32>,
    return
  }
  func.func @transform_0(%arg0: i32) -> (i32, i32) {
    %c0_i32 = arith.constant 0 : i32
    %c0_i32_0 = arith.constant 0 : i32
    return %arg0, %c0_i32 : i32, i32
  }
  func.func @transform_1(%arg0: i32) -> (i32, i32) {
    %c0_i32 = arith.constant 0 : i32
    %c0_i32_0 = arith.constant 0 : i32
    return %arg0, %c0_i32 : i32, i32
  }
  func.func @transform_2(%arg0: i32) -> (i32, i32) {
    %c0_i32 = arith.constant 0 : i32
    %c0_i32_0 = arith.constant 0 : i32
    return %arg0, %c0_i32 : i32, i32
  }
  func.func @transform_3(%arg0: i32) -> (i32, i32) {
    %c0_i32 = arith.constant 0 : i32
    %c0_i32_0 = arith.constant 0 : i32
    return %arg0, %c0_i32 : i32, i32
  }
  func.func @transform_4(%arg0: i32) -> (i32, i32) {
    %c0_i32 = arith.constant 0 : i32
    %c0_i32_0 = arith.constant 0 : i32
    return %arg0, %c0_i32 : i32, i32
  }
}

</mosaic_0001>

<llo_original>
// kernel: tpu_custom_call.1
$region0: #{tpu_custom_call.1}
  #allocation0 [shape = 'u32[]', space=smem, size = 0x4, offset = 0x4, fixed_abs, tag = 'smem constant byte address 0x4 - core index']
  #allocation1 [shape = 'u32[144,128]{1,0:T(1,128)}', space=vmem, size = 0x12000, scoped, tag = 'internal scratch']
  %s0 = inlined_call_operand.vmem [shape: f32[16,1], index: 0, kind: input, shape index: {}]
  %s1 = inlined_call_operand.vmem [shape: f32[16,1], index: 1, kind: input, shape index: {}]
  %s2 = inlined_call_operand.vmem [shape: f32[16,128], index: 2, kind: input, shape index: {}]
  %s3 = inlined_call_operand.vmem [shape: f32[16,128], index: 3, kind: input, shape index: {}]
  %s4 = inlined_call_operand.hbm [shape: f32[16,128], index: 4, kind: output, shape index: {}]
  %s5 = sld [smem:[#allocation0]]
  $region49: #{tpu_custom_call.1} parent=0
    _
  %s7 = ssub.s32 1, %s5
  %s8 = scalar_select 0, %s7, %s5
  $region1: #{tpu_custom_call.1} parent=0
    #allocation2 [shape = 'u8[8192]{0}', space=vmem, size = 0x2000, scoped, tag = 'output window, operand 0']
    #allocation3 [shape = 's32[2]{0}', space=sflag, size = 0x8, scoped, tag = 'scoped memory for tpu_custom_call.1']
    %9 = vsyncpa [#allocation3], 0
    %s10 = scalar_lea.sflag [#allocation3], 1
    %11 = vsyncpa %s10, 0
    loop: start=0, step=1, limit=4
    $region2: #{tpu_custom_call.1} parent=1 // loop_pre_header
      _
    $region3: #{tpu_custom_call.1} parent=1 // loop_header
      %s13 = sphi 0, %s17
      %p14 = scmp.ge.s32.totalorder %s13, 4
      %s23 = sphi 0, %s25
      %s26 = sphi 0, %s23
      %s27 = sphi 0, %s26
      %s43 = sphi 0, %s27
      %s49 = sphi 0, %s51
      %s52 = sphi 0, %s49
      %s53 = sphi 0, %s52
      %s69 = sphi 0, %s53
      %s75 = sphi 0, %s77
      %s78 = sphi 0, %s75
      %s79 = sphi 0, %s78
      %s95 = sphi 0, %s79
      %s101 = sphi 0, %s103
      %s104 = sphi 0, %s101
      %s105 = sphi 0, %s104
      %s121 = sphi 0, %s105
      %s127 = sphi 0, %s129
      %s130 = sphi 0, %s127
      %s131 = sphi 0, %s130
      %s147 = sphi 0, %s131
    $region4: #{tpu_custom_call.1} parent=1 // loop_header_branch
      %16 = sbr.rel (%p14) target = $region8
    $region5: #{tpu_custom_call.1} parent=1 // loop_body
      %s18 = ssub.s32 %s13, 1
      %s19 = ssub.s32 %s13, 2
      %s20 = sadd.s32 %s13, 1
      %s21 = ssub.s32 %s13, %s20
      %p22 = scmp.eq.s32.totalorder %s21, 0
      %s24 = sadd.s32 %s23, 1
      %s25 = scalar_select %p22, %s23, %s24
      %p28 = pneg %p22
      %p29 = scmp.eq.s32.totalorder %s13, 1
      %p30 = por %p28, %p29
      %p31 = scmp.ne.s32.totalorder %s23, %s26
      %p32 = scmp.eq.s32.totalorder %s13, 0
      %p33 = por %p31, %p32
      %p34 = scmp.ne.s32.totalorder %s23, %s26
      %p35 = scmp.eq.s32.totalorder %s18, 1
      %p36 = por %p34, %p35
      %p37 = scmp.ne.s32.totalorder %s26, %s27
      %p38 = scmp.eq.s32.totalorder %s18, 0
      %p39 = por %p37, %p38
      %p40 = scmp.ne.s32.totalorder %s26, %s27
      %p41 = scmp.eq.s32.totalorder %s19, 1
      %p42 = por %p40, %p41
      %p44 = scmp.ne.s32.totalorder %s27, %s43
      %p45 = scmp.eq.s32.totalorder %s19, 0
      %p46 = por %p44, %p45
      %s47 = ssub.s32 %s13, %s20
      %p48 = scmp.eq.s32.totalorder %s47, 0
      %s50 = sadd.s32 %s49, 1
      %s51 = scalar_select %p48, %s49, %s50
      %p54 = pneg %p48
      %p55 = scmp.eq.s32.totalorder %s13, 1
      %p56 = por %p54, %p55
      %p57 = scmp.ne.s32.totalorder %s49, %s52
      %p58 = scmp.eq.s32.totalorder %s13, 0
      %p59 = por %p57, %p58
      %p60 = scmp.ne.s32.totalorder %s49, %s52
      %p61 = scmp.eq.s32.totalorder %s18, 1
      %p62 = por %p60, %p61
      %p63 = scmp.ne.s32.totalorder %s52, %s53
      %p64 = scmp.eq.s32.totalorder %s18, 0
      %p65 = por %p63, %p64
      %p66 = scmp.ne.s32.totalorder %s52, %s53
      %p67 = scmp.eq.s32.totalorder %s19, 1
      %p68 = por %p66, %p67
      %p70 = scmp.ne.s32.totalorder %s53, %s69
      %p71 = scmp.eq.s32.totalorder %s19, 0
      %p72 = por %p70, %p71
      %s73 = ssub.s32 %s13, %s20
      %p74 = scmp.eq.s32.totalorder %s73, 0
      %s76 = sadd.s32 %s75, 1
      %s77 = scalar_select %p74, %s75, %s76
      %p80 = pneg %p74
      %p81 = scmp.eq.s32.totalorder %s13, 1
      %p82 = por %p80, %p81
      %p83 = scmp.ne.s32.totalorder %s75, %s78
      %p84 = scmp.eq.s32.totalorder %s13, 0
      %p85 = por %p83, %p84
      %p86 = scmp.ne.s32.totalorder %s75, %s78
      %p87 = scmp.eq.s32.totalorder %s18, 1
      %p88 = por %p86, %p87
      %p89 = scmp.ne.s32.totalorder %s78, %s79
      %p90 = scmp.eq.s32.totalorder %s18, 0
      %p91 = por %p89, %p90
      %p92 = scmp.ne.s32.totalorder %s78, %s79
      %p93 = scmp.eq.s32.totalorder %s19, 1
      %p94 = por %p92, %p93
      %p96 = scmp.ne.s32.totalorder %s79, %s95
      %p97 = scmp.eq.s32.totalorder %s19, 0
      %p98 = por %p96, %p97
      %s99 = ssub.s32 %s13, %s20
      %p100 = scmp.eq.s32.totalorder %s99, 0
      %s102 = sadd.s32 %s101, 1
      %s103 = scalar_select %p100, %s101, %s102
      %p106 = pneg %p100
      %p107 = scmp.eq.s32.totalorder %s13, 1
      %p108 = por %p106, %p107
      %p109 = scmp.ne.s32.totalorder %s101, %s104
      %p110 = scmp.eq.s32.totalorder %s13, 0
      %p111 = por %p109, %p110
      %p112 = scmp.ne.s32.totalorder %s101, %s104
      %p113 = scmp.eq.s32.totalorder %s18, 1
      %p114 = por %p112, %p113
      %p115 = scmp.ne.s32.totalorder %s104, %s105
      %p116 = scmp.eq.s32.totalorder %s18, 0
      %p117 = por %p115, %p116
      %p118 = scmp.ne.s32.totalorder %s104, %s105
      %p119 = scmp.eq.s32.totalorder %s19, 1
      %p120 = por %p118, %p119
      %p122 = scmp.ne.s32.totalorder %s105, %s121
      %p123 = scmp.eq.s32.totalorder %s19, 0
      %p124 = por %p122, %p123
      %s125 = ssub.s32 %s13, %s20
      %p126 = scmp.eq.s32.totalorder %s125, 0
      %s128 = sadd.s32 %s127, 1
      %s129 = scalar_select %p126, %s127, %s128
      %p132 = pneg %p126
      %p133 = scmp.eq.s32.totalorder %s13, 1
      %p134 = por %p132, %p133
      %p135 = scmp.ne.s32.totalorder %s127, %s130
      %p136 = scmp.eq.s32.totalorder %s13, 0
      %p137 = por %p135, %p136
      %p138 = scmp.ne.s32.totalorder %s127, %s130
      %p139 = scmp.eq.s32.totalorder %s18, 1
      %p140 = por %p138, %p139
      %p141 = scmp.ne.s32.totalorder %s130, %s131
      %p142 = scmp.eq.s32.totalorder %s18, 0
      %p143 = por %p141, %p142
      %p144 = scmp.ne.s32.totalorder %s130, %s131
      %p145 = scmp.eq.s32.totalorder %s19, 1
      %p146 = por %p144, %p145
      %p148 = scmp.ne.s32.totalorder %s131, %s147
      %p149 = scmp.eq.s32.totalorder %s19, 0
      %p150 = por %p148, %p149
      %p151 = scmp.le.s32.totalorder 1, %s13
      %p152 = scmp.lt.s32.totalorder %s13, 3
      %p153 = pnand %p151, %p152
      %p154 = pneg %p153
      // Predicated region
      $region9: #{tpu_custom_call.1} parent=5 // pred_check
        _
      $region10: #{tpu_custom_call.1} parent=5 // pred_check_branch
        %156 = sbr.rel (%p153) target = $region12
      $region11: #{tpu_custom_call.1} parent=5 // pred_region
        %s157 = ssub.s32 %s13, 1
      $region12: #{tpu_custom_call.1} parent=5 // pred_fallthru
        _
      %p158 = scmp.lt.s32.totalorder %s13, 2
      // Predicated region
      $region13: #{tpu_custom_call.1} parent=5 // pred_check
        %p159 = pneg %p158
      $region14: #{tpu_custom_call.1} parent=5 // pred_check_branch
        %161 = sbr.rel (%p159) target = $region16
      $region15: #{tpu_custom_call.1} parent=5 // pred_region
        // Predicated region
        $region17: #{tpu_custom_call.1} parent=15 // pred_check
          %p162 = pneg %p33
        $region18: #{tpu_custom_call.1} parent=15 // pred_check_branch
          %164 = sbr.rel (%p162) target = $region20
        $region19: #{tpu_custom_call.1} parent=15 // pred_region
          %p165 = scmp.lt.s32.totalorder %s13, 1
          %s166 = scalar_select %p165, %s13, 1
          %s167 = smul.addr %s166, 8
          %s168 = scalar_lea.vmem %s0, %s167
        $region20: #{tpu_custom_call.1} parent=15 // pred_fallthru
          _
        // Predicated region
        $region21: #{tpu_custom_call.1} parent=15 // pred_check
          %p169 = pneg %p59
        $region22: #{tpu_custom_call.1} parent=15 // pred_check_branch
          %171 = sbr.rel (%p169) target = $region24
        $region23: #{tpu_custom_call.1} parent=15 // pred_region
          %p172 = scmp.lt.s32.totalorder %s13, 1
          %s173 = scalar_select %p172, %s13, 1
          %s174 = smul.addr %s173, 8
          %s175 = scalar_lea.vmem %s1, %s174
        $region24: #{tpu_custom_call.1} parent=15 // pred_fallthru
          _
        // Predicated region
        $region25: #{tpu_custom_call.1} parent=15 // pred_check
          %p176 = pneg %p85
        $region26: #{tpu_custom_call.1} parent=15 // pred_check_branch
          %178 = sbr.rel (%p176) target = $region28
        $region27: #{tpu_custom_call.1} parent=15 // pred_region
          %p179 = scmp.lt.s32.totalorder %s13, 1
          %s180 = scalar_select %p179, %s13, 1
          %s181 = smul.addr %s180, 8
          %s182 = scalar_lea.vmem %s2, %s181
        $region28: #{tpu_custom_call.1} parent=15 // pred_fallthru
          _
        // Predicated region
        $region29: #{tpu_custom_call.1} parent=15 // pred_check
          %p183 = pneg %p111
        $region30: #{tpu_custom_call.1} parent=15 // pred_check_branch
          %185 = sbr.rel (%p183) target = $region32
        $region31: #{tpu_custom_call.1} parent=15 // pred_region
          %p186 = scmp.lt.s32.totalorder %s13, 1
          %s187 = scalar_select %p186, %s13, 1
          %s188 = smul.addr %s187, 8
          %s189 = scalar_lea.vmem %s3, %s188
        $region32: #{tpu_custom_call.1} parent=15 // pred_fallthru
          _
      $region16: #{tpu_custom_call.1} parent=5 // pred_fallthru
        _
      %p190 = scmp.le.s32.totalorder 1, %s13
      %p191 = scmp.lt.s32.totalorder %s13, 3
      %p192 = pnand %p190, %p191
      %p193 = pneg %p192
      // Predicated region
      $region33: #{tpu_custom_call.1} parent=5 // pred_check
        _
      $region34: #{tpu_custom_call.1} parent=5 // pred_check_branch
        %195 = sbr.rel (%p192) target = $region36
      $region35: #{tpu_custom_call.1} parent=5 // pred_region
        %s196 = ssub.s32 %s13, 1
        %p197 = scmp.lt.s32.totalorder %s18, 1
        %s198 = scalar_select %p197, %s18, 1
        %s199 = smul.addr %s198, 8
        %s200 = scalar_lea.vmem %s0, %s199
        %p201 = pneg %p39
        %p202 = pneg %p36
        %p203 = scmp.lt.s32.totalorder %s18, 1
        %s204 = scalar_select %p203, %s18, 1
        %s205 = smul.addr %s204, 8
        %s206 = scalar_lea.vmem %s1, %s205
        %p207 = pneg %p65
        %p208 = pneg %p62
        %p209 = scmp.lt.s32.totalorder %s18, 1
        %s210 = scalar_select %p209, %s18, 1
        %s211 = smul.addr %s210, 8
        %s212 = scalar_lea.vmem %s2, %s211
        %p213 = pneg %p91
        %p214 = pneg %p88
        %p215 = scmp.lt.s32.totalorder %s18, 1
        %s216 = scalar_select %p215, %s18, 1
        %s217 = smul.addr %s216, 8
        %s218 = scalar_lea.vmem %s3, %s217
        %p219 = pneg %p117
        %p220 = pneg %p114
        %p221 = pneg %p143
        %p222 = pneg %p140
        %s223 = sand.u32 %s130, 1
        %s224 = scalar_lea.sflag [#allocation3], %s223
        %s225 = sand.u32 %s130, 1
        %s226 = smul.addr %s225, 8
        %s227 = scalar_lea.vmem [#allocation2], %s226
        %p228 = scmp.lt.s32.totalorder %s18, 1
        %s229 = scalar_select %p228, %s18, 1
        %s230 = smul.addr %s229, 8
        %s231 = scalar_lea.vmem %s0, %s230
        %p232 = scmp.lt.s32.totalorder %s18, 1
        %s233 = scalar_select %p232, %s18, 1
        %s234 = smul.addr %s233, 8
        %s235 = scalar_lea.vmem %s1, %s234
        %p236 = scmp.lt.s32.totalorder %s18, 1
        %s237 = scalar_select %p236, %s18, 1
        %s238 = smul.addr %s237, 8
        %s239 = scalar_lea.vmem %s2, %s238
        %p240 = scmp.lt.s32.totalorder %s18, 1
        %s241 = scalar_select %p240, %s18, 1
        %s242 = smul.addr %s241, 8
        %s243 = scalar_lea.vmem %s3, %s242
        %v244 = vld [vmem:[%s239] sm:$0xff]
        %v245 = vld [vmem:[%s243] sm:$0xff]
        %v246 = vld [vmem:[%s231] sm:$0xff]
        %248 = vset.pattern.permute.xlu0 0
        %249 = vperm.xlu0 %248, %v246
        %v250 = vpop.permute.xlu0 %249
        %v252 = vmul.f32 %v250, %v244
        %v253 = vld [vmem:[%s235] sm:$0xff]
        %255 = vset.pattern.permute.xlu0 0
        %256 = vperm.xlu0 %255, %v253
        %v257 = vpop.permute.xlu0 %256
        %v259 = vmul.f32 %v257, %v245
        %v260 = vadd.f32 %v252, %v259
        %261 = vst [vmem:[%s227] sm:$0xff] %v260
        %s262 = sand.u32 %s130, 1
        %s263 = scalar_lea.sflag [#allocation3], %s262
        %s264 = sand.u32 %s130, 1
        %s265 = smul.addr %s264, 8
        %s266 = scalar_lea.vmem [#allocation2], %s265
        // Predicated region
        $region37: #{tpu_custom_call.1} parent=35 // pred_check
          %p267 = pneg %p140
        $region38: #{tpu_custom_call.1} parent=35 // pred_check_branch
          %269 = sbr.rel (%p267) target = $region40
        $region39: #{tpu_custom_call.1} parent=35 // pred_region
          %s271 = ssub.s32 128, 128
          %272 = vsyncadd %s263, %s271
          %s273 = smul.addr %s18, 128
          %s274 = scalar_lea.hbm %s4, %s273
          %s276 = sshll.u32 %s266, 4
          %s277 = int_to_ptr.vmem [resolvable:$true] %s276
          %279 = dma.vmem_to_hbm [thread:$0]  %s277, 128, %s274, %s263
        $region40: #{tpu_custom_call.1} parent=35 // pred_fallthru
          _
      $region36: #{tpu_custom_call.1} parent=5 // pred_fallthru
        _
      %p280 = scmp.le.s32.totalorder 2, %s13
      // Predicated region
      $region41: #{tpu_custom_call.1} parent=5 // pred_check
        %p281 = pneg %p280
      $region42: #{tpu_custom_call.1} parent=5 // pred_check_branch
        %283 = sbr.rel (%p281) target = $region44
      $region43: #{tpu_custom_call.1} parent=5 // pred_region
        %s284 = ssub.s32 %s13, 2
        // Predicated region
        $region45: #{tpu_custom_call.1} parent=43 // pred_check
          %p285 = pneg %p146
        $region46: #{tpu_custom_call.1} parent=43 // pred_check_branch
          %287 = sbr.rel (%p285) target = $region48
        $region47: #{tpu_custom_call.1} parent=43 // pred_region
          %s288 = sand.u32 %s131, 1
          %s289 = scalar_lea.sflag [#allocation3], %s288
          %s290 = sand.u32 %s131, 1
          %s291 = smul.addr %s290, 8
          %s292 = scalar_lea.vmem [#allocation2], %s291
          %293 = dma.done %s289, 128
        $region48: #{tpu_custom_call.1} parent=43 // pred_fallthru
          _
      $region44: #{tpu_custom_call.1} parent=5 // pred_fallthru
        _
    $region6: #{tpu_custom_call.1} parent=1 // loop_footer
      %s17 = sadd.s32 1, %s13
    $region7: #{tpu_custom_call.1} parent=1 // loop_footer_branch
      %12 = sbr.rel target = $region3
    $region8: #{tpu_custom_call.1} parent=1 // loop_exit
      _
    %294 = vsyncpa [#allocation3], 1
    %s295 = scalar_lea.sflag [#allocation3], 1
    %296 = vsyncpa %s295, 1

</llo_original>
